<compile_context>
chip_gen: v7x
topology: tpu7x:2x2x1
jax: 0.10.0
libtpu: 0.0.40
codegen_flags: <defaults>
</compile_context>

<pallas_src>
import numpy as np
import jax
import jax.numpy as jnp
from jax.experimental import pallas as pl
from jax.experimental.pallas import tpu as pltpu


# ---------------------------------------------------------------------------
# Fused kernel: language projection matmul + agg_lang_feat('average') pooling
# ---------------------------------------------------------------------------
def _proj_pool_kernel(tok_ref, mask_ref, invcnt_ref, w_ref, tokproj_ref, pooled_ref):
    tn, l, dl = tok_ref.shape
    dp = w_ref.shape[1]

    tok = tok_ref[...]                                   # (TN, L, Dl) f32 -- read once
    w = w_ref[...]                                       # (Dl, Dp)    bf16, resident

    # Projection: cast to bf16 in-kernel, f32 MXU accumulation.
    proj = jnp.dot(tok.astype(jnp.bfloat16).reshape(tn * l, dl), w,
                   preferred_element_type=jnp.float32)   # (TN*L, Dp)
    tokproj_ref[...] = proj.reshape(tn, l, dp)

    # Masked average pooling hoisted to input space (projection is linear).
    # mask comes in as (TN, L, 1): L already on sublanes, lane-broadcast is cheap.
    pooled_in = jnp.sum(tok * mask_ref[...], axis=1)     # (TN, Dl) f32
    pooled_in = pooled_in * invcnt_ref[...]              # exact 1/count from wrapper
    pooled_ref[...] = jnp.dot(pooled_in.astype(jnp.bfloat16), w,
                              preferred_element_type=jnp.float32)


def lang_project_and_pool(token_x, attn_mask, lang_projection):
    """token_x: [N, L, D_lang], attn_mask: [N, L] (0/1), proj: [D_lang, D_proj].

    Returns (projected_tokens [N, L, D_proj] f32, class_embeddings [N, D_proj] f32).
    """
    N, L, Dl = token_x.shape
    Dp = lang_projection.shape[1]

    # Batch tile: whole batch if small, else 32 rows (multiple of 8 sublanes).
    # Keeping TN modest leaves >=2 grid steps for realistic N so the "parallel"
    # axis can shard across v7x's two TensorCores.
    TN = N if N <= 32 else 32
    grid = (pl.cdiv(N, TN),)

    w_bf16 = lang_projection.astype(jnp.bfloat16)               # tiny wrapper cast
    mask3 = attn_mask.astype(jnp.float32).reshape(N, L, 1)      # L on sublanes
    # Exact reciprocal of the token count (matches agg_lang_feat; inf for an
    # all-zero mask exactly like the reference's divide-by-zero behavior).
    invcnt = 1.0 / attn_mask.sum(axis=-1, keepdims=True).astype(jnp.float32)

    tokproj, pooled = pl.pallas_call(
        _proj_pool_kernel,
        out_shape=(jax.ShapeDtypeStruct((N, L, Dp), jnp.float32),
                   jax.ShapeDtypeStruct((N, Dp), jnp.float32)),
        grid_spec=pltpu.PrefetchScalarGridSpec(
            num_scalar_prefetch=0,
            grid=grid,
            in_specs=[
                pl.BlockSpec((TN, L, Dl), lambda i: (i, 0, 0)),   # token tile (f32)
                pl.BlockSpec((TN, L, 1), lambda i: (i, 0, 0)),    # mask (L on sublanes)
                pl.BlockSpec((TN, 1), lambda i: (i, 0)),          # 1/count
                pl.BlockSpec((Dl, Dp), lambda i: (0, 0)),         # resident weight
            ],
            out_specs=[
                pl.BlockSpec((TN, L, Dp), lambda i: (i, 0, 0)),   # projected tokens
                pl.BlockSpec((TN, Dp), lambda i: (i, 0)),         # class embeddings
            ],
        ),
        compiler_params=pltpu.CompilerParams(
            dimension_semantics=("parallel",),
            # Safe on v5e (raises the 16 MiB default), well under v7x's 64 MiB VMEM.
            vmem_limit_bytes=48 * 1024 * 1024),
    )(token_x.astype(jnp.float32), mask3, invcnt, w_bf16)

    return tokproj, pooled


def evap_model_dpl_forward(images, token_x, attn_mask, lang_projection,
                           early_fusion=True):
    """Inference-only forward mirroring EVAP_Model_DPL's clip_frozen text path.

    `token_x` stands in for text_encoder(...)['last_hidden_state'].
    Returns (outputs_dict, fake_track_loss, dist_loss).  Fully jit-traceable.
    """
    extra = {}
    dist_loss = jnp.float32(0.0)

    # --- Pallas hot path: fused projection matmul + agg_lang_feat('average') ---
    tokproj, lang_feat_pool = lang_project_and_pool(token_x, attn_mask,
                                                    lang_projection)
    extra['class_embeddings'] = lang_feat_pool

    early_semantic = None
    if early_fusion:
        # gather_all_classtoken = token_x.flatten(0,1)[attention_mask.flatten(0,1) > 0]
        # Fixed-capacity (R = N*L) on-device compaction: stable sort of ~valid
        # followed by a take (no XLA scatter), valid tokens land as a prefix.
        N, L, Dp = tokproj.shape
        R = N * L
        flat_tok = tokproj.reshape(R, Dp)                       # free collapse
        flat_valid = attn_mask.reshape(R) > 0
        order = jnp.argsort(jnp.logical_not(flat_valid).astype(jnp.int32),
                            stable=True)
        gathered = jnp.take(flat_tok, order, axis=0)            # (R, Dp) f32
        n_valid = jnp.sum(flat_valid.astype(jnp.int32))
        valid_prefix = jnp.arange(R, dtype=jnp.int32) < n_valid
        # TODO(synk): the reference repeats these over the T video frames
        # (.repeat(len(images),1,1)); leading dim is kept at 1 here so the T-way
        # copy is never materialized -- the early-fusion consumer should broadcast.
        early_semantic = {'hidden': gathered[None],             # (1, R, Dp) f32
                          'masks': valid_prefix[None]}          # (1, R) valid prefix

    # TODO(synk): self.backbone(images), self.pixel_decoder.forward_features(...)
    # and self.predictor(...) are external sub-modules whose definitions are not
    # provided; they cannot be faithfully translated here.
    outputs = {'extra': extra, 'early_semantic': early_semantic}

    fake_track_loss = jnp.float32(0.0)
    return outputs, fake_track_loss, dist_loss


if __name__ == "__main__":
    key = jax.random.PRNGKey(0)
    k_tok, k_proj, k_img = jax.random.split(key, 3)

    # Small shapes consistent with the module's forward:
    T, C, H, W = 2, 3, 16, 16        # video frames, NCHW (only T is relevant here)
    N = 4                            # len(batch_name_list)
    L = 8                            # MAX_QUERY_LEN
    D_LANG = 64                      # MODEL.LANGUAGE_BACKBONE.LANG_DIM
    D_PROJ = 32                      # MODEL.DIM_PROJ

    images = jax.random.normal(k_img, (T, C, H, W), dtype=jnp.float32)
    token_x = jax.random.normal(k_tok, (N, L, D_LANG), dtype=jnp.float32)
    # lang_projection = nn.Parameter(torch.rand(LANG_DIM, DIM_PROJ)) -> uniform [0,1)
    lang_projection = jax.random.uniform(k_proj, (D_LANG, D_PROJ), dtype=jnp.float32)
    # attention mask with varying valid lengths (first tokens valid)
    lengths = np.array([3, 8, 5, 1], dtype=np.int32)
    attn_mask = jnp.asarray((np.arange(L)[None, :] < lengths[:, None]).astype(np.int32))

    outputs, fake_track_loss, dist_loss = evap_model_dpl_forward(
        images, token_x, attn_mask, lang_projection, early_fusion=True)

    cls_emb = jax.block_until_ready(outputs['extra']['class_embeddings'])
    hidden = jax.block_until_ready(outputs['early_semantic']['hidden'])
    masks = jax.block_until_ready(outputs['early_semantic']['masks'])
    jax.block_until_ready(fake_track_loss)
    jax.block_until_ready(dist_loss)

    # Pure-numpy reference of the implemented hot path (projection + agg_lang_feat).
    tok_np = np.asarray(token_x, dtype=np.float64)
    w_np = np.asarray(lang_projection, dtype=np.float64)
    mask_np = np.asarray(attn_mask, dtype=np.float64)
    ref_proj = tok_np @ w_np                                         # [N, L, Dp]
    ref_pool = (ref_proj * mask_np[..., None]).sum(1) / mask_np.sum(-1, keepdims=True)

    # bf16 matmul inputs -> relaxed tolerance vs the f64 reference.
    np.testing.assert_allclose(np.asarray(cls_emb), ref_pool, rtol=2e-2, atol=1e-1)

    # Check the early-fusion gather (valid tokens compacted to the front, in order).
    flat_valid_np = np.asarray(attn_mask).reshape(-1) > 0
    M = int(flat_valid_np.sum())
    ref_gather = ref_proj.reshape(-1, D_PROJ)[flat_valid_np]
    np.testing.assert_allclose(np.asarray(hidden[0, :M]), ref_gather,
                               rtol=2e-2, atol=1e-1)
    masks_np = np.asarray(masks)
    assert int(masks_np.sum()) == M
    assert bool(np.all(~masks_np[0, M:]))

    print("KERNEL_OK")
</pallas_src>

<mosaic_0001>
module attributes {stable_mosaic.version = 11 : i64} {
  func.func @_proj_pool_kernel(%arg0: i32, %arg1: memref<4x8x64xf32, #tpu.memory_space<vmem>>, %arg2: memref<4x8x1xf32, #tpu.memory_space<vmem>>, %arg3: memref<4x1xf32, #tpu.memory_space<vmem>>, %arg4: memref<64x32xbf16, #tpu.memory_space<vmem>>, %arg5: memref<4x8x32xf32, #tpu.memory_space<vmem>>, %arg6: memref<4x32xf32, #tpu.memory_space<vmem>>) attributes {dimension_semantics = [#tpu.dimension_semantics<parallel>], iteration_bounds = array<i64: 1>, scalar_prefetch = 0 : i64, scratch_operands = 0 : i64, tpu.core_type = #tpu.core_type<tc>, window_params = [{transform_indices = @transform_0, window_bounds = array<i64: 4, 8, 64>}, {transform_indices = @transform_1, window_bounds = array<i64: 4, 8, 1>}, {transform_indices = @transform_2, window_bounds = array<i64: 4, 1>}, {pipeline_mode = #tpu.pipeline_mode<synchronous>, transform_indices = @transform_3, window_bounds = array<i64: 64, 32>}, {transform_indices = @transform_4, window_bounds = array<i64: 4, 8, 32>}, {transform_indices = @transform_5, window_bounds = array<i64: 4, 32>}]} {
    %c0 = arith.constant 0 : index
    %c0_0 = arith.constant 0 : index
    %c0_1 = arith.constant 0 : index
    %0 = vector.load %arg1[%c0, %c0_0, %c0_1] : memref<4x8x64xf32, #tpu.memory_space<vmem>>, vector<4x8x64xf32>
    %c0_2 = arith.constant 0 : index
    %c0_3 = arith.constant 0 : index
    %1 = vector.load %arg4[%c0_2, %c0_3] : memref<64x32xbf16, #tpu.memory_space<vmem>>, vector<64x32xbf16>
    %2 = arith.truncf %0 : vector<4x8x64xf32> to vector<4x8x64xbf16>
    %3 = vector.shape_cast %2 : vector<4x8x64xbf16> to vector<32x64xbf16>
    %cst = arith.constant dense<0.000000e+00> : vector<32x32xf32>
    %4 = tpu.matmul %3, %1, %cst {dimension_numbers = #tpu.dot_dimension_numbers<[1], [0], [0], [1], [0, 0, 1, 1], [], []>} : vector<32x64xbf16>, vector<64x32xbf16>, vector<32x32xf32> -> vector<32x32xf32>
    %5 = vector.shape_cast %4 : vector<32x32xf32> to vector<4x8x32xf32>
    %c0_4 = arith.constant 0 : index
    %c0_5 = arith.constant 0 : index
    %c0_6 = arith.constant 0 : index
    %6 = vector.load %arg5[%c0_4, %c0_5, %c0_6] : memref<4x8x32xf32, #tpu.memory_space<vmem>>, vector<4x8x32xf32>
    tpu.vector_store %arg5[%c0_4, %c0_5, %c0_6], %5 {strides = array<i32>} : memref<4x8x32xf32, #tpu.memory_space<vmem>>, vector<4x8x32xf32>,
    %c0_7 = arith.constant 0 : index
    %c0_8 = arith.constant 0 : index
    %c0_9 = arith.constant 0 : index
    %7 = vector.load %arg2[%c0_7, %c0_8, %c0_9] : memref<4x8x1xf32, #tpu.memory_space<vmem>>, vector<4x8x1xf32>
    %8 = vector.broadcast %7 : vector<4x8x1xf32> to vector<4x8x64xf32>
    %9 = arith.mulf %0, %8 : vector<4x8x64xf32>
    %cst_10 = arith.constant dense<0.000000e+00> : vector<4x64xf32>
    %10 = vector.multi_reduction <add>, %9, %cst_10 [1] : vector<4x8x64xf32> to vector<4x64xf32>
    %c0_11 = arith.constant 0 : index
    %c0_12 = arith.constant 0 : index
    %11 = vector.load %arg3[%c0_11, %c0_12] : memref<4x1xf32, #tpu.memory_space<vmem>>, vector<4x1xf32>
    %12 = vector.broadcast %11 : vector<4x1xf32> to vector<4x64xf32>
    %13 = arith.mulf %10, %12 : vector<4x64xf32>
    %14 = arith.truncf %13 : vector<4x64xf32> to vector<4x64xbf16>
    %cst_13 = arith.constant dense<0.000000e+00> : vector<4x32xf32>
    %15 = tpu.matmul %14, %1, %cst_13 {dimension_numbers = #tpu.dot_dimension_numbers<[1], [0], [0], [1], [0, 0, 1, 1], [], []>} : vector<4x64xbf16>, vector<64x32xbf16>, vector<4x32xf32> -> vector<4x32xf32>
    %c0_14 = arith.constant 0 : index
    %c0_15 = arith.constant 0 : index
    %16 = vector.load %arg6[%c0_14, %c0_15] : memref<4x32xf32, #tpu.memory_space<vmem>>, vector<4x32xf32>
    tpu.vector_store %arg6[%c0_14, %c0_15], %15 {strides = array<i32>} : memref<4x32xf32, #tpu.memory_space<vmem>>, vector<4x32xf32>,
    return
  }
  func.func @transform_0(%arg0: i32) -> (i32, i32, i32) {
    %c0_i32 = arith.constant 0 : i32
    %c0_i32_0 = arith.constant 0 : i32
    %c0_i32_1 = arith.constant 0 : i32
    return %arg0, %c0_i32, %c0_i32_0 : i32, i32, i32
  }
  func.func @transform_1(%arg0: i32) -> (i32, i32, i32) {
    %c0_i32 = arith.constant 0 : i32
    %c0_i32_0 = arith.constant 0 : i32
    %c0_i32_1 = arith.constant 0 : i32
    return %arg0, %c0_i32, %c0_i32_0 : i32, i32, i32
  }
  func.func @transform_2(%arg0: i32) -> (i32, i32) {
    %c0_i32 = arith.constant 0 : i32
    %c0_i32_0 = arith.constant 0 : i32
    return %arg0, %c0_i32 : i32, i32
  }
  func.func @transform_3(%arg0: i32) -> (i32, i32) {
    %c0_i32 = arith.constant 0 : i32
    %c0_i32_0 = arith.constant 0 : i32
    %c0_i32_1 = arith.constant 0 : i32
    return %c0_i32, %c0_i32_0 : i32, i32
  }
  func.func @transform_4(%arg0: i32) -> (i32, i32, i32) {
    %c0_i32 = arith.constant 0 : i32
    %c0_i32_0 = arith.constant 0 : i32
    %c0_i32_1 = arith.constant 0 : i32
    return %arg0, %c0_i32, %c0_i32_0 : i32, i32, i32
  }
  func.func @transform_5(%arg0: i32) -> (i32, i32) {
    %c0_i32 = arith.constant 0 : i32
    %c0_i32_0 = arith.constant 0 : i32
    return %arg0, %c0_i32 : i32, i32
  }
}

</mosaic_0001>

<llo_original>
// kernel: tpu_custom_call.1
$region0: #{tpu_custom_call.1}
  #allocation0 [shape = 'u32[]', space=smem, size = 0x4, offset = 0x4, fixed_abs, tag = 'smem constant byte address 0x4 - core index']
  #allocation1 [shape = 'u32[144,128]{1,0:T(1,128)}', space=vmem, size = 0x12000, scoped, tag = 'internal scratch']
  %s0 = inlined_call_operand.vmem [shape: f32[4,8,64], index: 0, kind: input, shape index: {}]
  %s1 = inlined_call_operand.vmem [shape: f32[4,8,1], index: 1, kind: input, shape index: {}]
  %s2 = inlined_call_operand.vmem [shape: f32[4,1], index: 2, kind: input, shape index: {}]
  %s3 = inlined_call_operand.vmem [shape: bf16[64,32], index: 3, kind: input, shape index: {}]
  %s4 = inlined_call_operand.hbm [shape: f32[4,8,32], index: 4, kind: output, shape index: {0}]
  %s5 = inlined_call_operand.hbm [shape: f32[4,32], index: 5, kind: output, shape index: {1}]
  %6 = xla_tuple %s4, %s5
  %s7 = sld [smem:[#allocation0]]
  $region34: #{tpu_custom_call.1} parent=0
    _
  %s9 = ssub.s32 1, %s7
  %s10 = scalar_select 0, %s9, %s7
  $region1: #{tpu_custom_call.1} parent=0
    #allocation2 [shape = 'u8[16384]{0}', space=vmem, size = 0x4000, scoped, tag = 'output window, operand 0, single buffered']
    #allocation3 [shape = 's32[1]{0}', space=sflag, size = 0x4, scoped, tag = 'scoped memory for tpu_custom_call.1']
    #allocation4 [shape = 'u8[2048]{0}', space=vmem, size = 0x800, scoped, tag = 'output window, operand 1, single buffered']
    #allocation5 [shape = 's32[1]{0}', space=sflag, size = 0x4, scoped, tag = 'scoped memory for tpu_custom_call.1']
    %11 = vsyncpa [#allocation3], 0
    %12 = vsyncpa [#allocation5], 0
    // Predicated region
    $region2: #{tpu_custom_call.1} parent=1 // pred_check
      _
    $region3: #{tpu_custom_call.1} parent=1 // pred_check_branch
      %14 = sbr.rel (0) target = $region5
    $region4: #{tpu_custom_call.1} parent=1 // pred_region
      _
    $region5: #{tpu_custom_call.1} parent=1 // pred_fallthru
      _
    // Predicated region
    $region6: #{tpu_custom_call.1} parent=1 // pred_check
      _
    $region7: #{tpu_custom_call.1} parent=1 // pred_check_branch
      %16 = sbr.rel (0) target = $region9
    $region8: #{tpu_custom_call.1} parent=1 // pred_region
      _
    $region9: #{tpu_custom_call.1} parent=1 // pred_fallthru
      _
    // Predicated region
    $region10: #{tpu_custom_call.1} parent=1 // pred_check
      _
    $region11: #{tpu_custom_call.1} parent=1 // pred_check_branch
      %18 = sbr.rel (0) target = $region13
    $region12: #{tpu_custom_call.1} parent=1 // pred_region
      _
    $region13: #{tpu_custom_call.1} parent=1 // pred_fallthru
      _
    // Predicated region
    $region14: #{tpu_custom_call.1} parent=1 // pred_check
      _
    $region15: #{tpu_custom_call.1} parent=1 // pred_check_branch
      %20 = sbr.rel (0) target = $region17
    $region16: #{tpu_custom_call.1} parent=1 // pred_region
      _
    $region17: #{tpu_custom_call.1} parent=1 // pred_fallthru
      _
    %v22 = vld [vmem:[%s0] sm:$0xff]
    %v23 = vld [vmem:[%s0 + $0x8] sm:$0xff]
    %v24 = vld [vmem:[%s0 + $0x10] sm:$0xff]
    %v25 = vld [vmem:[%s0 + $0x18] sm:$0xff]
    %v26 = vld [vmem:[%s3] sm:$0xf]
    %v27 = vld [vmem:[%s3 + $0x4] sm:$0xf]
    %v28 = vld [vmem:[%s3 + $0x8] sm:$0xf]
    %v29 = vld [vmem:[%s3 + $0xc] sm:$0xf]
    %v30 = vld [vmem:[%s3 + $0x10] sm:$0xf]
    %v31 = vld [vmem:[%s3 + $0x14] sm:$0xf]
    %v32 = vld [vmem:[%s3 + $0x18] sm:$0xf]
    %v33 = vld [vmem:[%s3 + $0x1c] sm:$0xf]
    %v34 = vpack.c.bf16 %v22, %v22
    %v35 = vpack.c.bf16 %v23, %v23
    %v36 = vpack.c.bf16 %v24, %v24
    %v37 = vpack.c.bf16 %v25, %v25
    %v42 = vunpack.c.l.b16 %v34
    %v43 = vunpack.c.l.b16 %v35
    %v44 = vunpack.c.l.b16 %v36
    %v45 = vunpack.c.l.b16 %v37
    %v46 = vpack.c.b16 %v43, %v42
    %v47 = vpack.c.b16 %v45, %v44
    %v56 = vunpack.c.l.b16 %v26
    %v57 = vunpack.c.l.b16 %v27
    %v58 = vunpack.c.l.b16 %v28
    %v59 = vunpack.c.l.b16 %v29
    %v60 = vunpack.c.l.b16 %v30
    %v61 = vunpack.c.l.b16 %v31
    %v62 = vunpack.c.l.b16 %v32
    %v63 = vunpack.c.l.b16 %v33
    %v64 = vpack.c.b16 %v57, %v56
    %v65 = vpack.c.b16 %v59, %v58
    %v66 = vpack.c.b16 %v61, %v60
    %v67 = vpack.c.b16 %v63, %v62
    %vm72 = vcmask 523264
    %v74 = vsel %vm72, %v46, 0
    %v77 = vsel %vm72, %v47, 0
    %79 = vmatprep.subr.bf16.mxu0 0
    %80 = vmatpush1.bf16.msra.mxu0 %v64
    %81 = vmatprep.subr.bf16.mxu0 0
    %82 = vmatpush1.bf16.msra.mxu0 %v65
    %83 = vmatprep.subr.bf16.mxu0 0
    %84 = vmatpush1.bf16.msra.mxu0 %v66
    %85 = vmatprep.subr.bf16.mxu0 0
    %86 = vmatpush1.bf16.msra.mxu0 %v67
    %87 = vmatprep.subr.bf16.mxu0 0
    %88 = vmatpush1.bf16.msra.mxu0 0
    %89 = vmatprep.subr.bf16.mxu0 0
    %90 = vmatpush1.bf16.msra.mxu0 0
    %91 = vmatprep.subr.bf16.mxu0 0
    %92 = vmatpush1.bf16.msra.mxu0 0
    %93 = vmatprep.subr.bf16.mxu0 0
    %94 = vmatpush1.bf16.msra.mxu0 0
    %95 = vmatprep.subr.bf16.mxu0 0
    %96 = vmatpush1.bf16.msra.mxu0 0
    %97 = vmatprep.subr.bf16.mxu0 0
    %98 = vmatpush1.bf16.msra.mxu0 0
    %99 = vmatprep.subr.bf16.mxu0 0
    %100 = vmatpush1.bf16.msra.mxu0 0
    %101 = vmatprep.subr.bf16.mxu0 0
    %102 = vmatpush1.bf16.msra.mxu0 0
    %103 = vmatprep.subr.bf16.mxu0 0
    %104 = vmatpush1.bf16.msra.mxu0 0
    %105 = vmatprep.subr.bf16.mxu0 0
    %106 = vmatpush1.bf16.msra.mxu0 0
    %107 = vmatprep.subr.bf16.mxu0 0
    %108 = vmatpush1.bf16.msra.mxu0 0
    %109 = vmatprep.subr.bf16.mxu0 0
    %110 = vmatpush1.bf16.msra.mxu0 0
    %111 = vmatprep.mubr.bf16.mxu0 0
    %112 = vmatmul.mubr.bf16.gmra.mrb[0].mxu0 %v74
    %v113 = vpop.f32.mrb[0].mxu0
    %v114 = vadd.f32 0.0, %v113
    %v115 = vpop.f32.mrb[0].mxu0
    %v116 = vpop.f32.mrb[0].mxu0
    %v117 = vadd.f32 0.0, %v116
    %v118 = vpop.f32.mrb[0].mxu0
    %119 = vmatprep.mubr.bf16.mxu0 0
    %120 = vmatmul.mubr.bf16.gmra.mrb[0].mxu0 %v77
    %v121 = vpop.f32.mrb[0].mxu0
    %v122 = vadd.f32 0.0, %v121
    %v123 = vpop.f32.mrb[0].mxu0
    %v124 = vpop.f32.mrb[0].mxu0
    %v125 = vadd.f32 0.0, %v124
    %v126 = vpop.f32.mrb[0].mxu0
    %127 = vdwg.mxu0
    %vm128 = vcmask 261120
    %129 = vst.msk [vmem:[#allocation2] sm:$0xff] %vm128, %v114
    %130 = vst.msk [vmem:[#allocation2 + $0x8] sm:$0xff] %vm128, %v117
    %131 = vst.msk [vmem:[#allocation2 + $0x10] sm:$0xff] %vm128, %v122
    %132 = vst.msk [vmem:[#allocation2 + $0x18] sm:$0xff] %vm128, %v125
    %v133 = vld [vmem:[%s1] sm:$0xff]
    %v134 = vld [vmem:[%s1 + $0x8] sm:$0xff]
    %v135 = vld [vmem:[%s1 + $0x10] sm:$0xff]
    %v136 = vld [vmem:[%s1 + $0x18] sm:$0xff]
    %138 = vset.pattern.permute.xlu0 0
    %139 = vperm.xlu0 %138, %v133
    %v140 = vpop.permute.xlu0 %139
    %143 = vset.pattern.permute.xlu0 0
    %144 = vperm.xlu0 %143, %v134
    %v145 = vpop.permute.xlu0 %144
    %148 = vset.pattern.permute.xlu0 0
    %149 = vperm.xlu0 %148, %v135
    %v150 = vpop.permute.xlu0 %149
    %153 = vset.pattern.permute.xlu0 0
    %154 = vperm.xlu0 %153, %v136
    %v155 = vpop.permute.xlu0 %154
    %v157 = vmul.f32 %v22, %v140
    %v158 = vmul.f32 %v23, %v145
    %v159 = vmul.f32 %v24, %v150
    %v160 = vmul.f32 %v25, %v155
    %v161 = vsel %vm72, %v157, 0.0
    %v162 = vrot.slane %v161, 4
    %v163 = vadd.f32 %v161, %v162
    %v164 = vrot.slane %v163, 2
    %v165 = vadd.f32 %v163, %v164
    %v166 = vrot.slane %v165, 1
    %v167 = vadd.f32 %v165, %v166
    %v168 = vsel %vm72, %v158, 0.0
    %v169 = vrot.slane %v168, 4
    %v170 = vadd.f32 %v168, %v169
    %v171 = vrot.slane %v170, 2
    %v172 = vadd.f32 %v170, %v171
    %v173 = vrot.slane %v172, 1
    %v174 = vadd.f32 %v172, %v173
    %v175 = vsel %vm72, %v159, 0.0
    %v176 = vrot.slane %v175, 4
    %v177 = vadd.f32 %v175, %v176
    %v178 = vrot.slane %v177, 2
    %v179 = vadd.f32 %v177, %v178
    %v180 = vrot.slane %v179, 1
    %v181 = vadd.f32 %v179, %v180
    %v182 = vsel %vm72, %v160, 0.0
    %v183 = vrot.slane %v182, 4
    %v184 = vadd.f32 %v182, %v183
    %v185 = vrot.slane %v184, 2
    %v186 = vadd.f32 %v184, %v185
    %v187 = vrot.slane %v186, 1
    %v188 = vadd.f32 %v186, %v187
    %v189 = vld [vmem:[%s2] sm:$0xf]
    %191 = vset.pattern.permute.xlu0 0
    %192 = vperm.xlu0 %191, %v189
    %v193 = vpop.permute.xlu0 %192
    %v194 = vrot.slane %v193, 1
    %v195 = vrot.slane %v193, 2
    %v196 = vrot.slane %v193, 3
    %v201 = vmul.f32 %v167, %v193
    %v202 = vmul.f32 %v174, %v194
    %v203 = vmul.f32 %v181, %v195
    %v204 = vmul.f32 %v188, %v196
    %v205 = vpack.c.bf16 %v201, %v201
    %v206 = vpack.c.bf16 %v202, %v202
    %v207 = vpack.c.bf16 %v203, %v203
    %v208 = vpack.c.bf16 %v204, %v204
    %v213 = vunpack.c.l.b16 %v205
    %v214 = vunpack.c.l.b16 %v206
    %v215 = vunpack.c.l.b16 %v207
    %v216 = vunpack.c.l.b16 %v208
    %v217 = vrot.slane %v214, 7
    %vm218 = vcmask 1041409
    %v219 = vsel %vm218, %v217, %v213
    %v220 = vrot.slane %v215, 6
    %vm221 = vcmask 1042434
    %v222 = vsel %vm221, %v220, %v219
    %v223 = vrot.slane %v216, 5
    %vm224 = vcmask 1043459
    %v225 = vsel %vm224, %v223, %v222
    %v226 = vpack.c.b16 %v225, %v225
    %v228 = vsel %vm72, %v226, 0
    %230 = vmatprep.subr.bf16.mxu0 0
    %231 = vmatpush1.bf16.msra.mxu0 %v64
    %232 = vmatprep.subr.bf16.mxu0 0
    %233 = vmatpush1.bf16.msra.mxu0 %v65
    %234 = vmatprep.subr.bf16.mxu0 0
    %235 = vmatpush1.bf16.msra.mxu0 %v66
    %236 = vmatprep.subr.bf16.mxu0 0
    %237 = vmatpush1.bf16.msra.mxu0 %v67
    %238 = vmatprep.subr.bf16.mxu0 0
    %239 = vmatpush1.bf16.msra.mxu0 0
    %240 = vmatprep.subr.bf16.mxu0 0
    %241 = vmatpush1.bf16.msra.mxu0 0
    %242 = vmatprep.subr.bf16.mxu0 0
    %243 = vmatpush1.bf16.msra.mxu0 0
    %244 = vmatprep.subr.bf16.mxu0 0
    %245 = vmatpush1.bf16.msra.mxu0 0
    %246 = vmatprep.subr.bf16.mxu0 0
    %247 = vmatpush1.bf16.msra.mxu0 0
    %248 = vmatprep.subr.bf16.mxu0 0
    %249 = vmatpush1.bf16.msra.mxu0 0
    %250 = vmatprep.subr.bf16.mxu0 0
    %251 = vmatpush1.bf16.msra.mxu0 0
    %252 = vmatprep.subr.bf16.mxu0 0
    %253 = vmatpush1.bf16.msra.mxu0 0
    %254 = vmatprep.subr.bf16.mxu0 0
    %255 = vmatpush1.bf16.msra.mxu0 0
    %256 = vmatprep.subr.bf16.mxu0 0
    %257 = vmatpush1.bf16.msra.mxu0 0
    %258 = vmatprep.subr.bf16.mxu0 0
    %259 = vmatpush1.bf16.msra.mxu0 0
    %260 = vmatprep.subr.bf16.mxu0 0
    %261 = vmatpush1.bf16.msra.mxu0 0
    %262 = vmatprep.mubr.bf16.mxu0 0
    %263 = vmatmul.mubr.bf16.gmra.mrb[0].mxu0 %v228
    %v264 = vpop.f32.mrb[0].mxu0
    %v265 = vadd.f32 0.0, %v264
    %v266 = vpop.f32.mrb[0].mxu0
    %v267 = vpop.f32.mrb[0].mxu0
    %v268 = vpop.f32.mrb[0].mxu0
    %269 = vdwg.mxu0
    %vm270 = vcmask 257024
    %271 = vst.msk [vmem:[#allocation4] sm:$0xf] %vm270, %v265
    // Predicated region
    $region18: #{tpu_custom_call.1} parent=1 // pred_check
      _
    $region19: #{tpu_custom_call.1} parent=1 // pred_check_branch
      %273 = sbr.rel (0) target = $region21
    $region20: #{tpu_custom_call.1} parent=1 // pred_region
      %s275 = ssub.s32 512, 512
      %276 = vsyncadd [#allocation3], %s275
      %s277 = sshll.u32 [#allocation2], 4
      %s278 = int_to_ptr.vmem [resolvable:$true] %s277
      %283 = dma.vmem_to_hbm [thread:$0]  %s278, 512, %s4, [#allocation3], 128, 128, 8
    $region21: #{tpu_custom_call.1} parent=1 // pred_fallthru
      _
    // Predicated region
    $region22: #{tpu_custom_call.1} parent=1 // pred_check
      _
    $region23: #{tpu_custom_call.1} parent=1 // pred_check_branch
      %285 = sbr.rel (0) target = $region25
    $region24: #{tpu_custom_call.1} parent=1 // pred_region
      %s287 = ssub.s32 64, 64
      %288 = vsyncadd [#allocation5], %s287
      %s290 = sshll.u32 [#allocation4], 4
      %s291 = int_to_ptr.vmem [resolvable:$true] %s290
      %293 = dma.vmem_to_hbm [thread:$0]  %s291, 64, %s5, [#allocation5]
    $region25: #{tpu_custom_call.1} parent=1 // pred_fallthru
      _
    // Predicated region
    $region26: #{tpu_custom_call.1} parent=1 // pred_check
      _
    $region27: #{tpu_custom_call.1} parent=1 // pred_check_branch
      %295 = sbr.rel (0) target = $region29
    $region28: #{tpu_custom_call.1} parent=1 // pred_region
      %296 = dma.done [#allocation3], 512
    $region29: #{tpu_custom_call.1} parent=1 // pred_fallthru
      _
    // Predicated region
    $region30: #{tpu_custom_call.1} parent=1 // pred_check
      _
    $region31: #{tpu_custom_call.1} parent=1 // pred_check_branch
      %298 = sbr.rel (0) target = $region33
    $region32: #{tpu_custom_call.1} parent=1 // pred_region
      %299 = dma.done [#allocation5], 64
    $region33: #{tpu_custom_call.1} parent=1 // pred_fallthru
      _
    %300 = vsyncpa [#allocation3], 1
    %301 = vsyncpa [#allocation5], 1

</llo_original>
